<compile_context>
chip_gen: v6e
topology: v6e:2x2x1
jax: 0.10.0
libtpu: 0.0.40
codegen_flags: <defaults>
</compile_context>

<pallas_src>
import jax
import jax.numpy as jnp
from jax.experimental import pallas as pl
from jax.experimental.pallas import tpu as pltpu

IN_DIM = 4
K_PAD = 8       # fc1 contraction dim zero-padded to one full sublane (MXU path)
HIDDEN = 128
OUT_DIM = 2


def _round_up(n, m):
    return ((n + m - 1) // m) * m


def qnet_kernel(x_ref, w1_ref, b_ref, w23_ref, o_ref):
    # x_ref  : (TB, 8)        f32   batch tile, cols 4..7 are zero padding
    # w1_ref : (8, 128)       f32   fc1 weight, rows 4..7 are zero
    # b_ref  : (3, 128)       f32   rows = [b1, b2, b3 (zero-padded)]
    # w23_ref: (2, 128, 128)  bf16  [w2, w3 (zero-padded to 128 cols)]
    # o_ref  : (TB, 2)        f32   real logits only (no lane padding in HBM)
    b1 = b_ref[0:1, :]
    b2 = b_ref[1:2, :]
    b3 = b_ref[2:3, :]

    # fc1 on the MXU (K padded 4 -> 8), f32 operands, f32 accumulate.
    h1 = jnp.dot(x_ref[...], w1_ref[...],
                 preferred_element_type=jnp.float32) + b1
    h1 = jnp.maximum(h1, 0.0)                                  # (TB, 128) f32

    # fc2 + ReLU: bf16 MXU matmul, f32 accumulate, f32 bias/activation math.
    h2 = jnp.dot(h1.astype(jnp.bfloat16), w23_ref[0],
                 preferred_element_type=jnp.float32) + b2
    h2 = jnp.maximum(h2, 0.0)                                  # (TB, 128) f32

    # fc3: computed lane-padded to 128 output cols on the MXU (padded cols are
    # zero), but only the 2 real logit columns are stored to HBM.
    out = jnp.dot(h2.astype(jnp.bfloat16), w23_ref[1],
                  preferred_element_type=jnp.float32) + b3     # (TB, 128) f32
    o_ref[...] = out[:, :OUT_DIM]


def qnet_forward(x, params, tb_max=2048):
    """x: (B, 4) float32. params: w1,b1,w2,b2,w3,b3 in (in_features, out_features) layout."""
    w1 = params["w1"].astype(jnp.float32)      # (4, 128)
    b1 = params["b1"].astype(jnp.float32)      # (1, 128)
    w2 = params["w2"].astype(jnp.float32)      # (128, 128)
    b2 = params["b2"].astype(jnp.float32)      # (1, 128)
    w3 = params["w3"].astype(jnp.float32)      # (128, 2)
    b3 = params["b3"].astype(jnp.float32)      # (1, 2)

    B = x.shape[0]
    # Adaptive batch tile:
    #   * B (rounded to 8) fits in one tile up to tb_max -> grid = 1, no waste.
    #   * Larger B -> balanced tiles (multiple of 8) so padding waste is small
    #     and grid >= 2 (keeps both v7x TensorCores busy for big batches).
    b8 = _round_up(max(B, 1), 8)
    if b8 <= tb_max:
        TB = b8
    else:
        n_tiles = -(-b8 // tb_max)
        TB = _round_up(-(-b8 // n_tiles), 8)
    B_pad = _round_up(B, TB)
    grid = B_pad // TB

    # Pad activations: batch rows to B_pad, feature cols 4 -> 8 (zeros).
    x = x.astype(jnp.float32)
    x = jnp.pad(x, ((0, B_pad - B), (0, K_PAD - IN_DIM)))

    # Pack weights / biases into few resident operands.
    w1p = jnp.zeros((K_PAD, HIDDEN), jnp.float32).at[:IN_DIM, :].set(w1)
    w3p = jnp.zeros((HIDDEN, HIDDEN), jnp.float32).at[:, :OUT_DIM].set(w3)
    b3p = jnp.zeros((1, HIDDEN), jnp.float32).at[:, :OUT_DIM].set(b3)
    w23 = jnp.stack([w2, w3p]).astype(jnp.bfloat16)            # (2, 128, 128) bf16
    b_all = jnp.concatenate([b1, b2, b3p], axis=0)             # (3, 128) f32

    out = pl.pallas_call(
        qnet_kernel,
        out_shape=jax.ShapeDtypeStruct((B_pad, OUT_DIM), jnp.float32),
        grid=(grid,),
        in_specs=[
            # activations: tiled over the batch grid axis (pipelined DMA)
            pl.BlockSpec((TB, K_PAD), lambda i: (i, 0)),
            # weights / biases: constant block index -> resident, DMA'd once
            pl.BlockSpec((K_PAD, HIDDEN), lambda i: (0, 0)),
            pl.BlockSpec((3, HIDDEN), lambda i: (0, 0)),
            pl.BlockSpec((2, HIDDEN, HIDDEN), lambda i: (0, 0, 0)),
        ],
        out_specs=pl.BlockSpec((TB, OUT_DIM), lambda i: (i, 0)),
        compiler_params=pltpu.CompilerParams(
            dimension_semantics=("parallel",),   # batch tiles are independent
        ),
    )(x, w1p, b_all, w23)

    return out[:B, :]


def init_params(key):
    """Deterministic init matching PyTorch Linear default (uniform +-1/sqrt(fan_in))."""
    ks = jax.random.split(key, 6)

    def linear(kw, kb, fan_in, fan_out):
        bound = 1.0 / jnp.sqrt(fan_in)
        w = jax.random.uniform(kw, (fan_in, fan_out), jnp.float32, -bound, bound)
        b = jax.random.uniform(kb, (1, fan_out), jnp.float32, -bound, bound)
        return w, b

    w1, b1 = linear(ks[0], ks[1], 4, 128)
    w2, b2 = linear(ks[2], ks[3], 128, 128)
    w3, b3 = linear(ks[4], ks[5], 128, 2)
    return {"w1": w1, "b1": b1, "w2": w2, "b2": b2, "w3": w3, "b3": b3}


def qnet_reference(x, p):
    """Pure-JAX f32 reference of the PyTorch forward pass."""
    h1 = jnp.maximum(x @ p["w1"] + p["b1"], 0.0)
    h2 = jnp.maximum(h1 @ p["w2"] + p["b2"], 0.0)
    return h2 @ p["w3"] + p["b3"]


# TODO(synk): `sample_action` (host-side epsilon-greedy with Python RNG) has no
# Pallas equivalent; only the forward pass is implemented here.

if __name__ == "__main__":
    key = jax.random.PRNGKey(0)
    k_params, k_x, k_x2 = jax.random.split(key, 3)

    params = init_params(k_params)

    # CartPole observation dim = 4; small batch of 8 observations (grid = 1).
    x = jax.random.normal(k_x, (8, 4), dtype=jnp.float32)
    out = jax.block_until_ready(qnet_forward(x, params))
    ref = qnet_reference(x, params)
    assert out.shape == (8, 2)
    # bf16 weights on the fc2/fc3 MXU path -> compare against the f32
    # reference with a modest tolerance.
    assert jnp.allclose(out, ref, atol=2e-2, rtol=2e-2), "mismatch vs reference (B=8)"

    # Exercise the multi-tile / padded-batch path (grid > 1) at a small shape
    # by lowering tb_max: B=260 -> TB=88, B_pad=264, grid=3.
    x2 = jax.random.normal(k_x2, (260, 4), dtype=jnp.float32)
    out2 = jax.block_until_ready(qnet_forward(x2, params, tb_max=128))
    ref2 = qnet_reference(x2, params)
    assert out2.shape == (260, 2)
    assert jnp.allclose(out2, ref2, atol=2e-2, rtol=2e-2), "mismatch vs reference (B=260)"

    print("KERNEL_OK")
</pallas_src>

<mosaic_0001>
module attributes {stable_mosaic.version = 11 : i64} {
  func.func @qnet_kernel(%arg0: i32, %arg1: memref<8x8xf32, #tpu.memory_space<vmem>>, %arg2: memref<8x128xf32, #tpu.memory_space<vmem>>, %arg3: memref<3x128xf32, #tpu.memory_space<vmem>>, %arg4: memref<2x128x128xbf16, #tpu.memory_space<vmem>>, %arg5: memref<8x2xf32, #tpu.memory_space<vmem>>) attributes {dimension_semantics = [#tpu.dimension_semantics<parallel>], iteration_bounds = array<i64: 1>, scalar_prefetch = 0 : i64, scratch_operands = 0 : i64, tpu.core_type = #tpu.core_type<tc>, window_params = [{transform_indices = @transform_0, window_bounds = array<i64: 8, 8>}, {pipeline_mode = #tpu.pipeline_mode<synchronous>, transform_indices = @transform_1, window_bounds = array<i64: 8, 128>}, {pipeline_mode = #tpu.pipeline_mode<synchronous>, transform_indices = @transform_2, window_bounds = array<i64: 3, 128>}, {pipeline_mode = #tpu.pipeline_mode<synchronous>, transform_indices = @transform_3, window_bounds = array<i64: 2, 128, 128>}, {transform_indices = @transform_4, window_bounds = array<i64: 8, 2>}]} {
    %c0 = arith.constant 0 : index
    %c0_0 = arith.constant 0 : index
    %0 = vector.load %arg3[%c0, %c0_0] : memref<3x128xf32, #tpu.memory_space<vmem>>, vector<1x128xf32>
    %c1 = arith.constant 1 : index
    %c0_1 = arith.constant 0 : index
    %1 = vector.load %arg3[%c1, %c0_1] : memref<3x128xf32, #tpu.memory_space<vmem>>, vector<1x128xf32>
    %c2 = arith.constant 2 : index
    %c0_2 = arith.constant 0 : index
    %2 = vector.load %arg3[%c2, %c0_2] : memref<3x128xf32, #tpu.memory_space<vmem>>, vector<1x128xf32>
    %c0_3 = arith.constant 0 : index
    %c0_4 = arith.constant 0 : index
    %3 = vector.load %arg1[%c0_3, %c0_4] : memref<8x8xf32, #tpu.memory_space<vmem>>, vector<8x8xf32>
    %c0_5 = arith.constant 0 : index
    %c0_6 = arith.constant 0 : index
    %4 = vector.load %arg2[%c0_5, %c0_6] : memref<8x128xf32, #tpu.memory_space<vmem>>, vector<8x128xf32>
    %cst = arith.constant dense<0.000000e+00> : vector<8x128xf32>
    %5 = tpu.matmul %3, %4, %cst {dimension_numbers = #tpu.dot_dimension_numbers<[1], [0], [0], [1], [0, 0, 1, 1], [], []>} : vector<8x8xf32>, vector<8x128xf32>, vector<8x128xf32> -> vector<8x128xf32>
    %6 = vector.broadcast %0 : vector<1x128xf32> to vector<8x128xf32>
    %7 = arith.addf %5, %6 : vector<8x128xf32>
    %cst_7 = arith.constant 0.000000e+00 : f32
    %8 = vector.broadcast %cst_7 : f32 to vector<8x128xf32>
    %9 = arith.maximumf %7, %8 : vector<8x128xf32>
    %10 = arith.truncf %9 : vector<8x128xf32> to vector<8x128xbf16>
    %c0_8 = arith.constant 0 : index
    %c0_9 = arith.constant 0 : index
    %c0_10 = arith.constant 0 : index
    %11 = vector.load %arg4[%c0_8, %c0_9, %c0_10] : memref<2x128x128xbf16, #tpu.memory_space<vmem>>, vector<1x128x128xbf16>
    %12 = vector.shape_cast %11 : vector<1x128x128xbf16> to vector<128x128xbf16>
    %cst_11 = arith.constant dense<0.000000e+00> : vector<8x128xf32>
    %13 = tpu.matmul %10, %12, %cst_11 {dimension_numbers = #tpu.dot_dimension_numbers<[1], [0], [0], [1], [0, 0, 1, 1], [], []>} : vector<8x128xbf16>, vector<128x128xbf16>, vector<8x128xf32> -> vector<8x128xf32>
    %14 = vector.broadcast %1 : vector<1x128xf32> to vector<8x128xf32>
    %15 = arith.addf %13, %14 : vector<8x128xf32>
    %cst_12 = arith.constant 0.000000e+00 : f32
    %16 = vector.broadcast %cst_12 : f32 to vector<8x128xf32>
    %17 = arith.maximumf %15, %16 : vector<8x128xf32>
    %18 = arith.truncf %17 : vector<8x128xf32> to vector<8x128xbf16>
    %c1_13 = arith.constant 1 : index
    %c0_14 = arith.constant 0 : index
    %c0_15 = arith.constant 0 : index
    %19 = vector.load %arg4[%c1_13, %c0_14, %c0_15] : memref<2x128x128xbf16, #tpu.memory_space<vmem>>, vector<1x128x128xbf16>
    %20 = vector.shape_cast %19 : vector<1x128x128xbf16> to vector<128x128xbf16>
    %cst_16 = arith.constant dense<0.000000e+00> : vector<8x128xf32>
    %21 = tpu.matmul %18, %20, %cst_16 {dimension_numbers = #tpu.dot_dimension_numbers<[1], [0], [0], [1], [0, 0, 1, 1], [], []>} : vector<8x128xbf16>, vector<128x128xbf16>, vector<8x128xf32> -> vector<8x128xf32>
    %22 = vector.broadcast %2 : vector<1x128xf32> to vector<8x128xf32>
    %23 = arith.addf %21, %22 : vector<8x128xf32>
    %24 = vector.extract_strided_slice %23 {offsets = [0, 0], sizes = [8, 2], strides = [1, 1]} : vector<8x128xf32> to vector<8x2xf32>
    %c0_17 = arith.constant 0 : index
    %c0_18 = arith.constant 0 : index
    %25 = vector.load %arg5[%c0_17, %c0_18] : memref<8x2xf32, #tpu.memory_space<vmem>>, vector<8x2xf32>
    tpu.vector_store %arg5[%c0_17, %c0_18], %24 {strides = array<i32>} : memref<8x2xf32, #tpu.memory_space<vmem>>, vector<8x2xf32>,
    return
  }
  func.func @transform_0(%arg0: i32) -> (i32, i32) {
    %c0_i32 = arith.constant 0 : i32
    %c0_i32_0 = arith.constant 0 : i32
    return %arg0, %c0_i32 : i32, i32
  }
  func.func @transform_1(%arg0: i32) -> (i32, i32) {
    %c0_i32 = arith.constant 0 : i32
    %c0_i32_0 = arith.constant 0 : i32
    %c0_i32_1 = arith.constant 0 : i32
    return %c0_i32, %c0_i32_0 : i32, i32
  }
  func.func @transform_2(%arg0: i32) -> (i32, i32) {
    %c0_i32 = arith.constant 0 : i32
    %c0_i32_0 = arith.constant 0 : i32
    %c0_i32_1 = arith.constant 0 : i32
    return %c0_i32, %c0_i32_0 : i32, i32
  }
  func.func @transform_3(%arg0: i32) -> (i32, i32, i32) {
    %c0_i32 = arith.constant 0 : i32
    %c0_i32_0 = arith.constant 0 : i32
    %c0_i32_1 = arith.constant 0 : i32
    %c0_i32_2 = arith.constant 0 : i32
    return %c0_i32, %c0_i32_0, %c0_i32_1 : i32, i32, i32
  }
  func.func @transform_4(%arg0: i32) -> (i32, i32) {
    %c0_i32 = arith.constant 0 : i32
    %c0_i32_0 = arith.constant 0 : i32
    return %arg0, %c0_i32 : i32, i32
  }
}

</mosaic_0001>

<llo_original>
// kernel: tpu_custom_call.1
$region0: #{tpu_custom_call.1}
  #allocation0 [shape = 'u32[]', space=smem, size = 0x4, offset = 0x4, fixed_abs, tag = 'smem constant byte address 0x4 - core index']
  #allocation1 [shape = 'u32[144,128]{1,0:T(1,128)}', space=vmem, size = 0x12000, scoped, tag = 'internal scratch']
  %s0 = inlined_call_operand.hbm [shape: f32[8,8], index: 0, kind: input, shape index: {}]
  %s1 = inlined_call_operand.hbm [shape: f32[8,128], index: 1, kind: input, shape index: {}]
  %s2 = inlined_call_operand.hbm [shape: f32[3,128], index: 2, kind: input, shape index: {}]
  %s3 = inlined_call_operand.hbm [shape: bf16[2,128,128], index: 3, kind: input, shape index: {}]
  %s4 = inlined_call_operand.vmem [shape: f32[8,2], index: 4, kind: output, shape index: {}]
  %s5 = sld [smem:[#allocation0]]
  $region42: #{tpu_custom_call.1} parent=0
    _
  %s7 = ssub.s32 1, %s5
  %s8 = scalar_select 0, %s7, %s5
  $region1: #{tpu_custom_call.1} parent=0
    #allocation2 [shape = 'u8[4096]{0}', space=vmem, size = 0x1000, scoped, tag = 'input window, operand 0, single buffered']
    #allocation3 [shape = 's32[1]{0}', space=sflag, size = 0x4, scoped, tag = 'scoped memory for tpu_custom_call.1']
    #allocation4 [shape = 'u8[4096]{0}', space=vmem, size = 0x1000, scoped, tag = 'input window, operand 1, single buffered']
    #allocation5 [shape = 's32[1]{0}', space=sflag, size = 0x4, scoped, tag = 'scoped memory for tpu_custom_call.1']
    #allocation6 [shape = 'u8[2048]{0}', space=vmem, size = 0x800, scoped, tag = 'input window, operand 2, single buffered']
    #allocation7 [shape = 'u8[65536]{0}', space=vmem, size = 0x10000, scoped, tag = 'input window, operand 3, single buffered']
    #allocation8 [shape = 's32[1]{0}', space=sflag, size = 0x4, scoped, tag = 'scoped memory for tpu_custom_call.1']
    %9 = vsyncpa [#allocation3], 0
    %10 = vsyncpa [#allocation5], 0
    %11 = vsyncpa [#allocation8], 0
    // Predicated region
    $region2: #{tpu_custom_call.1} parent=1 // pred_check
      _
    $region3: #{tpu_custom_call.1} parent=1 // pred_check_branch
      %13 = sbr.rel (0) target = $region5
    $region4: #{tpu_custom_call.1} parent=1 // pred_region
      %s15 = ssub.s32 128, 128
      %16 = vsyncadd [#allocation3], %s15
      %s18 = sshll.u32 [#allocation2], 4
      %s19 = int_to_ptr.vmem [resolvable:$true] %s18
      %21 = dma.hbm_to_vmem [thread:$0]  %s0, 128, %s19, [#allocation3]
    $region5: #{tpu_custom_call.1} parent=1 // pred_fallthru
      _
    // Predicated region
    $region6: #{tpu_custom_call.1} parent=1 // pred_check
      _
    $region7: #{tpu_custom_call.1} parent=1 // pred_check_branch
      %23 = sbr.rel (0) target = $region9
    $region8: #{tpu_custom_call.1} parent=1 // pred_region
      %s25 = ssub.s32 128, 128
      %26 = vsyncadd [#allocation5], %s25
      %s28 = sshll.u32 [#allocation4], 4
      %s29 = int_to_ptr.vmem [resolvable:$true] %s28
      %31 = dma.hbm_to_vmem [thread:$0]  %s1, 128, %s29, [#allocation5]
    $region9: #{tpu_custom_call.1} parent=1 // pred_fallthru
      _
    // Predicated region
    $region10: #{tpu_custom_call.1} parent=1 // pred_check
      _
    $region11: #{tpu_custom_call.1} parent=1 // pred_check_branch
      %33 = sbr.rel (0) target = $region13
    $region12: #{tpu_custom_call.1} parent=1 // pred_region
      %s35 = ssub.s32 64, 64
      %36 = vsyncadd [#allocation5], %s35
      %s38 = sshll.u32 [#allocation6], 4
      %s39 = int_to_ptr.vmem [resolvable:$true] %s38
      %41 = dma.hbm_to_vmem [thread:$0]  %s2, 64, %s39, [#allocation5]
    $region13: #{tpu_custom_call.1} parent=1 // pred_fallthru
      _
    // Predicated region
    $region14: #{tpu_custom_call.1} parent=1 // pred_check
      _
    $region15: #{tpu_custom_call.1} parent=1 // pred_check_branch
      %43 = sbr.rel (0) target = $region17
    $region16: #{tpu_custom_call.1} parent=1 // pred_region
      %s45 = ssub.s32 2048, 2048
      %46 = vsyncadd [#allocation8], %s45
      %s47 = sshll.u32 [#allocation7], 4
      %s48 = int_to_ptr.vmem [resolvable:$true] %s47
      %53 = dma.hbm_to_vmem [thread:$0]  %s3, 2048, %s48, [#allocation8], 64, 64, 4
    $region17: #{tpu_custom_call.1} parent=1 // pred_fallthru
      _
    // Predicated region
    $region18: #{tpu_custom_call.1} parent=1 // pred_check
      _
    $region19: #{tpu_custom_call.1} parent=1 // pred_check_branch
      %55 = sbr.rel (0) target = $region21
    $region20: #{tpu_custom_call.1} parent=1 // pred_region
      %56 = dma.done [#allocation3], 128
    $region21: #{tpu_custom_call.1} parent=1 // pred_fallthru
      _
    // Predicated region
    $region22: #{tpu_custom_call.1} parent=1 // pred_check
      _
    $region23: #{tpu_custom_call.1} parent=1 // pred_check_branch
      %58 = sbr.rel (0) target = $region25
    $region24: #{tpu_custom_call.1} parent=1 // pred_region
      %59 = dma.done [#allocation5], 128
    $region25: #{tpu_custom_call.1} parent=1 // pred_fallthru
      _
    // Predicated region
    $region26: #{tpu_custom_call.1} parent=1 // pred_check
      _
    $region27: #{tpu_custom_call.1} parent=1 // pred_check_branch
      %61 = sbr.rel (0) target = $region29
    $region28: #{tpu_custom_call.1} parent=1 // pred_region
      %62 = dma.done [#allocation5], 64
    $region29: #{tpu_custom_call.1} parent=1 // pred_fallthru
      _
    // Predicated region
    $region30: #{tpu_custom_call.1} parent=1 // pred_check
      _
    $region31: #{tpu_custom_call.1} parent=1 // pred_check_branch
      %64 = sbr.rel (0) target = $region33
    $region32: #{tpu_custom_call.1} parent=1 // pred_region
      %65 = dma.done [#allocation8], 2048
    $region33: #{tpu_custom_call.1} parent=1 // pred_fallthru
      _
    %v67 = vld [vmem:[#allocation6] sm:$0x1]
    %v68 = vld [vmem:[#allocation6 + $0x1] sm:$0x1]
    %v69 = vld [vmem:[#allocation6 + $0x2] sm:$0x1]
    %v70 = vld [vmem:[#allocation2] sm:$0xff]
    %v71 = vld [vmem:[#allocation4] sm:$0xff]
    %v72 = vlaneseq
    %v73 = vshrl.u32 %v72, 7
    %v74 = vsub.s32 0, %v73
    %v75 = vrot.slane %v67, %v74
    %vm76 = vcmask 64512
    %v78 = vsel %vm76, %v70, 0
    %80 = vmatprep.subr.mxu0 0.0
    %81 = vmatpush1.msra.mxu0 0.0
    %82 = vmatprep.subr.mxu0 0.0
    %83 = vmatpush1.msra.mxu0 0.0
    %84 = vmatprep.subr.mxu0 0.0
    %85 = vmatpush1.msra.mxu0 0.0
    %86 = vmatprep.subr.mxu0 0.0
    %87 = vmatpush1.msra.mxu0 0.0
    %88 = vmatprep.subr.mxu0 0.0
    %89 = vmatpush1.msra.mxu0 0.0
    %90 = vmatprep.subr.mxu0 0.0
    %91 = vmatpush1.msra.mxu0 0.0
    %92 = vmatprep.subr.mxu0 0.0
    %93 = vmatpush1.msra.mxu0 0.0
    %94 = vmatprep.subr.mxu0 0.0
    %95 = vmatpush1.msra.mxu0 0.0
    %96 = vmatprep.subr.mxu0 0.0
    %97 = vmatpush1.msra.mxu0 0.0
    %98 = vmatprep.subr.mxu0 0.0
    %99 = vmatpush1.msra.mxu0 0.0
    %100 = vmatprep.subr.mxu0 0.0
    %101 = vmatpush1.msra.mxu0 0.0
    %102 = vmatprep.subr.mxu0 0.0
    %103 = vmatpush1.msra.mxu0 0.0
    %104 = vmatprep.subr.mxu0 0.0
    %105 = vmatpush1.msra.mxu0 0.0
    %106 = vmatprep.subr.mxu0 0.0
    %107 = vmatpush1.msra.mxu0 0.0
    %108 = vmatprep.subr.mxu0 0.0
    %109 = vmatpush1.msra.mxu0 0.0
    %110 = vmatprep.subr.mxu0 0.0
    %111 = vmatpush1.msra.mxu0 %v71
    %112 = vmatprep.subr.mxu0 0.0
    %113 = vmatpush2.msra.mxu0 0.0
    %114 = vmatprep.subr.mxu0 0.0
    %115 = vmatpush2.msra.mxu0 0.0
    %116 = vmatprep.subr.mxu0 0.0
    %117 = vmatpush2.msra.mxu0 0.0
    %118 = vmatprep.subr.mxu0 0.0
    %119 = vmatpush2.msra.mxu0 0.0
    %120 = vmatprep.subr.mxu0 0.0
    %121 = vmatpush2.msra.mxu0 0.0
    %122 = vmatprep.subr.mxu0 0.0
    %123 = vmatpush2.msra.mxu0 0.0
    %124 = vmatprep.subr.mxu0 0.0
    %125 = vmatpush2.msra.mxu0 0.0
    %126 = vmatprep.subr.mxu0 0.0
    %127 = vmatpush2.msra.mxu0 0.0
    %128 = vmatprep.subr.mxu0 0.0
    %129 = vmatpush2.msra.mxu0 0.0
    %130 = vmatprep.subr.mxu0 0.0
    %131 = vmatpush2.msra.mxu0 0.0
    %132 = vmatprep.subr.mxu0 0.0
    %133 = vmatpush2.msra.mxu0 0.0
    %134 = vmatprep.subr.mxu0 0.0
    %135 = vmatpush2.msra.mxu0 0.0
    %136 = vmatprep.subr.mxu0 0.0
    %137 = vmatpush2.msra.mxu0 0.0
    %138 = vmatprep.subr.mxu0 0.0
    %139 = vmatpush2.msra.mxu0 0.0
    %140 = vmatprep.subr.mxu0 0.0
    %141 = vmatpush2.msra.mxu0 0.0
    %142 = vmatprep.subr.mxu0 0.0
    %143 = vmatpush2.msra.mxu0 0.0
    %144 = vmatprep.mubr.f32.mxu0 0.0
    %145 = vmatmul.mubr.f32.gmra.mxu0 %v78
    %v146 = vpop.f32.mrf.mxu0
    %v147 = vadd.f32 %v75, %v146
    %v148 = vpop.f32.mrf.mxu0
    %149 = vdwg.mxu0
    %v150 = vmax.f32 %v147, 0.0
    %v151 = vpack.c.bf16 %v150, %v150
    %v152 = vld [vmem:[#allocation7] sm:$0xf]
    %v153 = vld [vmem:[#allocation7 + $0x4] sm:$0xf]
    %v154 = vld [vmem:[#allocation7 + $0x8] sm:$0xf]
    %v155 = vld [vmem:[#allocation7 + $0xc] sm:$0xf]
    %v156 = vld [vmem:[#allocation7 + $0x10] sm:$0xf]
    %v157 = vld [vmem:[#allocation7 + $0x14] sm:$0xf]
    %v158 = vld [vmem:[#allocation7 + $0x18] sm:$0xf]
    %v159 = vld [vmem:[#allocation7 + $0x1c] sm:$0xf]
    %v160 = vld [vmem:[#allocation7 + $0x20] sm:$0xf]
    %v161 = vld [vmem:[#allocation7 + $0x24] sm:$0xf]
    %v162 = vld [vmem:[#allocation7 + $0x28] sm:$0xf]
    %v163 = vld [vmem:[#allocation7 + $0x2c] sm:$0xf]
    %v164 = vld [vmem:[#allocation7 + $0x30] sm:$0xf]
    %v165 = vld [vmem:[#allocation7 + $0x34] sm:$0xf]
    %v166 = vld [vmem:[#allocation7 + $0x38] sm:$0xf]
    %v167 = vld [vmem:[#allocation7 + $0x3c] sm:$0xf]
    %v168 = vlaneseq
    %v169 = vshrl.u32 %v168, 7
    %v170 = vsub.s32 0, %v169
    %v171 = vrot.slane %v68, %v170
    %v188 = vunpack.c.l.b16 %v152
    %v189 = vunpack.c.l.b16 %v153
    %v190 = vunpack.c.l.b16 %v154
    %v191 = vunpack.c.l.b16 %v155
    %v192 = vunpack.c.l.b16 %v156
    %v193 = vunpack.c.l.b16 %v157
    %v194 = vunpack.c.l.b16 %v158
    %v195 = vunpack.c.l.b16 %v159
    %v196 = vunpack.c.l.b16 %v160
    %v197 = vunpack.c.l.b16 %v161
    %v198 = vunpack.c.l.b16 %v162
    %v199 = vunpack.c.l.b16 %v163
    %v200 = vunpack.c.l.b16 %v164
    %v201 = vunpack.c.l.b16 %v165
    %v202 = vunpack.c.l.b16 %v166
    %v203 = vunpack.c.l.b16 %v167
    %v204 = vpack.c.b16 %v189, %v188
    %v205 = vpack.c.b16 %v191, %v190
    %v206 = vpack.c.b16 %v193, %v192
    %v207 = vpack.c.b16 %v195, %v194
    %v208 = vpack.c.b16 %v197, %v196
    %v209 = vpack.c.b16 %v199, %v198
    %v210 = vpack.c.b16 %v201, %v200
    %v211 = vpack.c.b16 %v203, %v202
    %220 = vmatprep.subr.bf16.mxu0 0
    %221 = vmatpush1.bf16.msra.mxu0 %v211
    %222 = vmatprep.subr.bf16.mxu0 0
    %223 = vmatpush1.bf16.msra.mxu0 %v210
    %224 = vmatprep.subr.bf16.mxu0 0
    %225 = vmatpush1.bf16.msra.mxu0 %v209
    %226 = vmatprep.subr.bf16.mxu0 0
    %227 = vmatpush1.bf16.msra.mxu0 %v208
    %228 = vmatprep.subr.bf16.mxu0 0
    %229 = vmatpush1.bf16.msra.mxu0 %v207
    %230 = vmatprep.subr.bf16.mxu0 0
    %231 = vmatpush1.bf16.msra.mxu0 %v206
    %232 = vmatprep.subr.bf16.mxu0 0
    %233 = vmatpush1.bf16.msra.mxu0 %v205
    %234 = vmatprep.subr.bf16.mxu0 0
    %235 = vmatpush1.bf16.msra.mxu0 %v204
    %236 = vmatprep.subr.bf16.mxu0 0
    %237 = vmatpush2.bf16.msra.mxu0 0
    %238 = vmatprep.subr.bf16.mxu0 0
    %239 = vmatpush2.bf16.msra.mxu0 0
    %240 = vmatprep.subr.bf16.mxu0 0
    %241 = vmatpush2.bf16.msra.mxu0 0
    %242 = vmatprep.subr.bf16.mxu0 0
    %243 = vmatpush2.bf16.msra.mxu0 0
    %244 = vmatprep.subr.bf16.mxu0 0
    %245 = vmatpush2.bf16.msra.mxu0 0
    %246 = vmatprep.subr.bf16.mxu0 0
    %247 = vmatpush2.bf16.msra.mxu0 0
    %248 = vmatprep.subr.bf16.mxu0 0
    %249 = vmatpush2.bf16.msra.mxu0 0
    %250 = vmatprep.subr.bf16.mxu0 0
    %251 = vmatpush2.bf16.msra.mxu0 0
    %252 = vmatprep.mubr.bf16.mxu0 0
    %253 = vmatmul.mubr.bf16.gmra.mxu0 %v151
    %v254 = vpop.f32.mrf.mxu0
    %v255 = vadd.f32 %v171, %v254
    %v256 = vpop.f32.mrf.mxu0
    %v257 = vpop.f32.mrf.mxu0
    %v258 = vpop.f32.mrf.mxu0
    %259 = vdwg.mxu0
    %v260 = vmax.f32 %v255, 0.0
    %v261 = vpack.c.bf16 %v260, %v260
    %s262 = scalar_lea.vmem [#allocation7], 64
    %v263 = vld [vmem:[%s262] sm:$0xf]
    %v264 = vld [vmem:[%s262 + $0x4] sm:$0xf]
    %v265 = vld [vmem:[%s262 + $0x8] sm:$0xf]
    %v266 = vld [vmem:[%s262 + $0xc] sm:$0xf]
    %v267 = vld [vmem:[%s262 + $0x10] sm:$0xf]
    %v268 = vld [vmem:[%s262 + $0x14] sm:$0xf]
    %v269 = vld [vmem:[%s262 + $0x18] sm:$0xf]
    %v270 = vld [vmem:[%s262 + $0x1c] sm:$0xf]
    %v271 = vld [vmem:[%s262 + $0x20] sm:$0xf]
    %v272 = vld [vmem:[%s262 + $0x24] sm:$0xf]
    %v273 = vld [vmem:[%s262 + $0x28] sm:$0xf]
    %v274 = vld [vmem:[%s262 + $0x2c] sm:$0xf]
    %v275 = vld [vmem:[%s262 + $0x30] sm:$0xf]
    %v276 = vld [vmem:[%s262 + $0x34] sm:$0xf]
    %v277 = vld [vmem:[%s262 + $0x38] sm:$0xf]
    %v278 = vld [vmem:[%s262 + $0x3c] sm:$0xf]
    %v279 = vlaneseq
    %v280 = vshrl.u32 %v279, 7
    %v281 = vsub.s32 0, %v280
    %v282 = vrot.slane %v69, %v281
    %v299 = vunpack.c.l.b16 %v263
    %v300 = vunpack.c.l.b16 %v264
    %v301 = vunpack.c.l.b16 %v265
    %v302 = vunpack.c.l.b16 %v266
    %v303 = vunpack.c.l.b16 %v267
    %v304 = vunpack.c.l.b16 %v268
    %v305 = vunpack.c.l.b16 %v269
    %v306 = vunpack.c.l.b16 %v270
    %v307 = vunpack.c.l.b16 %v271
    %v308 = vunpack.c.l.b16 %v272
    %v309 = vunpack.c.l.b16 %v273
    %v310 = vunpack.c.l.b16 %v274
    %v311 = vunpack.c.l.b16 %v275
    %v312 = vunpack.c.l.b16 %v276
    %v313 = vunpack.c.l.b16 %v277
    %v314 = vunpack.c.l.b16 %v278
    %v315 = vpack.c.b16 %v300, %v299
    %v316 = vpack.c.b16 %v302, %v301
    %v317 = vpack.c.b16 %v304, %v303
    %v318 = vpack.c.b16 %v306, %v305
    %v319 = vpack.c.b16 %v308, %v307
    %v320 = vpack.c.b16 %v310, %v309
    %v321 = vpack.c.b16 %v312, %v311
    %v322 = vpack.c.b16 %v314, %v313
    %331 = vmatprep.subr.bf16.mxu0 0
    %332 = vmatpush1.bf16.msra.mxu0 %v322
    %333 = vmatprep.subr.bf16.mxu0 0
    %334 = vmatpush1.bf16.msra.mxu0 %v321
    %335 = vmatprep.subr.bf16.mxu0 0
    %336 = vmatpush1.bf16.msra.mxu0 %v320
    %337 = vmatprep.subr.bf16.mxu0 0
    %338 = vmatpush1.bf16.msra.mxu0 %v319
    %339 = vmatprep.subr.bf16.mxu0 0
    %340 = vmatpush1.bf16.msra.mxu0 %v318
    %341 = vmatprep.subr.bf16.mxu0 0
    %342 = vmatpush1.bf16.msra.mxu0 %v317
    %343 = vmatprep.subr.bf16.mxu0 0
    %344 = vmatpush1.bf16.msra.mxu0 %v316
    %345 = vmatprep.subr.bf16.mxu0 0
    %346 = vmatpush1.bf16.msra.mxu0 %v315
    %347 = vmatprep.subr.bf16.mxu0 0
    %348 = vmatpush2.bf16.msra.mxu0 0
    %349 = vmatprep.subr.bf16.mxu0 0
    %350 = vmatpush2.bf16.msra.mxu0 0
    %351 = vmatprep.subr.bf16.mxu0 0
    %352 = vmatpush2.bf16.msra.mxu0 0
    %353 = vmatprep.subr.bf16.mxu0 0
    %354 = vmatpush2.bf16.msra.mxu0 0
    %355 = vmatprep.subr.bf16.mxu0 0
    %356 = vmatpush2.bf16.msra.mxu0 0
    %357 = vmatprep.subr.bf16.mxu0 0
    %358 = vmatpush2.bf16.msra.mxu0 0
    %359 = vmatprep.subr.bf16.mxu0 0
    %360 = vmatpush2.bf16.msra.mxu0 0
    %361 = vmatprep.subr.bf16.mxu0 0
    %362 = vmatpush2.bf16.msra.mxu0 0
    %363 = vmatprep.mubr.bf16.mxu0 0
    %364 = vmatmul.mubr.bf16.gmra.mxu0 %v261
    %v365 = vpop.f32.mrf.mxu0
    %v366 = vadd.f32 %v282, %v365
    %v367 = vpop.f32.mrf.mxu0
    %v368 = vpop.f32.mrf.mxu0
    %v369 = vpop.f32.mrf.mxu0
    %370 = vdwg.mxu0
    %vm371 = vcmask 15360
    %372 = vst.msk [vmem:[%s4] sm:$0xff] %vm371, %v366
    // Predicated region
    $region34: #{tpu_custom_call.1} parent=1 // pred_check
      _
    $region35: #{tpu_custom_call.1} parent=1 // pred_check_branch
      %374 = sbr.rel (0) target = $region37
    $region36: #{tpu_custom_call.1} parent=1 // pred_region
      _
    $region37: #{tpu_custom_call.1} parent=1 // pred_fallthru
      _
    // Predicated region
    $region38: #{tpu_custom_call.1} parent=1 // pred_check
      _
    $region39: #{tpu_custom_call.1} parent=1 // pred_check_branch
      %376 = sbr.rel (0) target = $region41
    $region40: #{tpu_custom_call.1} parent=1 // pred_region
      _
    $region41: #{tpu_custom_call.1} parent=1 // pred_fallthru
      _
    %377 = vsyncpa [#allocation3], 1
    %378 = vsyncpa [#allocation5], 1
    %379 = vsyncpa [#allocation8], 1

</llo_original>
